<compile_context>
chip_gen: v6e
topology: v6e:2x2x1
jax: 0.10.0
libtpu: 0.0.40
codegen_flags: <defaults>
</compile_context>

<pallas_src>
import functools

import jax
import jax.numpy as jnp
from jax.experimental import pallas as pl
from jax.experimental.pallas import tpu as pltpu


def _mean_vfe_kernel(vox_ref, npts_ref, out_ref, *, p: int, c: int, g: int):
    # vox_ref : (R, g*P*C) float32 -- g voxels packed per row along lanes
    # npts_ref: (R, g)     int32
    # out_ref : (R, g*C)   float32
    npts = jnp.maximum(npts_ref[...].astype(out_ref.dtype), 1.0)   # (R, g)
    for j in range(g):                       # unrolled: g, P are small & static
        base = j * p * c
        s = vox_ref[:, base:base + c]
        for q in range(1, p):
            s = s + vox_ref[:, base + q * c: base + (q + 1) * c]
        out_ref[:, j * c:(j + 1) * c] = (s / npts[:, j:j + 1]).astype(out_ref.dtype)


def _round_up(x: int, m: int) -> int:
    return (x + m - 1) // m * m


def _pick_group(n: int, p: int, c: int, *, max_unrolled: int = 256,
                max_lanes: int = 4096) -> int:
    """Largest voxels-per-row packing factor that keeps the layout free."""
    for g in (32, 16, 8, 4, 2, 1):
        if n % g == 0 and g * p <= max_unrolled and g * p * c <= max_lanes:
            return g
    return 1


def mean_vfe(voxels, voxel_num_points, *, tile_rows=None, group=None,
             vmem_budget_bytes: int = 12 << 20):
    """voxels: (N, P, C) float; voxel_num_points: (N,) int.  Returns (N, C)."""
    n, p, c = voxels.shape
    g = _pick_group(n, p, c) if group is None else int(group)
    assert n % g == 0, "packing factor must divide num_voxels"
    rows = n // g
    lanes_in = g * p * c
    lanes_out = g * c
    itemsize = jnp.dtype(voxels.dtype).itemsize

    # Free, contiguous views (pure reshapes of contiguous buffers).
    vox2d = voxels.reshape(rows, lanes_in)
    npts2d = voxel_num_points.reshape(rows, g)          # stays int; cast in-kernel

    if tile_rows is None:
        # Per-row VMEM cost of one pipeline step, counting lane padding to 128
        # and the default double-buffered (x2) pipeline for every operand.
        bytes_per_row = 2 * (
            itemsize * _round_up(lanes_in, 128)          # voxel input block
            + 4 * _round_up(g, 128)                      # num-points block (i32)
            + itemsize * _round_up(lanes_out, 128)       # output block
        )
        tile_rows = max(8, vmem_budget_bytes // bytes_per_row)
        tile_rows = min(tile_rows, 2048)   # measured gains flatten past ~1-2k rows
    tile_rows = int(tile_rows)
    if rows <= 8:
        tile_rows = rows                                 # full-extent block: legal
    else:
        tile_rows = min(tile_rows, _round_up(rows, 8))   # never bigger than needed
        tile_rows = max(8, (tile_rows // 8) * 8)         # sublane multiple of 8

    grid = (pl.cdiv(rows, tile_rows),)

    out2d = pl.pallas_call(
        functools.partial(_mean_vfe_kernel, p=p, c=c, g=g),
        out_shape=jax.ShapeDtypeStruct((rows, lanes_out), voxels.dtype),
        grid_spec=pltpu.PrefetchScalarGridSpec(
            num_scalar_prefetch=0,
            grid=grid,
            in_specs=[
                pl.BlockSpec((tile_rows, lanes_in), lambda i: (i, 0)),
                pl.BlockSpec((tile_rows, g), lambda i: (i, 0)),
            ],
            out_specs=pl.BlockSpec((tile_rows, lanes_out), lambda i: (i, 0)),
        ),
        compiler_params=pltpu.CompilerParams(
            dimension_semantics=("parallel",),
        ),
    )(vox2d, npts2d)

    return out2d.reshape(n, c)


def _ref_mean_vfe(voxels, voxel_num_points):
    return voxels.sum(axis=1) / jnp.maximum(
        voxel_num_points.reshape(-1, 1).astype(voxels.dtype), 1.0
    )


if __name__ == "__main__":
    # MeanVFE has no learnable parameters (num_point_features only reports the
    # output dim), so there is nothing to initialize.
    key = jax.random.PRNGKey(0)
    k_vox, k_np, k3v, k3n, k4v, k4n = jax.random.split(key, 6)

    # (1) Small random case (N voxels, P points-per-voxel, C point features).
    num_voxels, max_points, num_point_features = 16, 8, 4
    voxels = jax.random.normal(
        k_vox, (num_voxels, max_points, num_point_features), dtype=jnp.float32
    )
    voxel_num_points = jax.random.randint(
        k_np, (num_voxels,), minval=0, maxval=max_points + 1, dtype=jnp.int32
    )
    # Mimic real voxel buffers: zero out unused point slots.
    slot_ids = jnp.arange(max_points)[None, :, None]
    voxels = jnp.where(slot_ids < voxel_num_points[:, None, None], voxels, 0.0)

    out = jax.block_until_ready(mean_vfe(voxels, voxel_num_points))
    assert out.shape == (num_voxels, num_point_features)
    assert jnp.allclose(out, _ref_mean_vfe(voxels, voxel_num_points),
                        atol=1e-5, rtol=1e-5)

    # (2) Exact tensors from the PyTorch spec (N=2, P=4, C=4).
    voxels_spec = jnp.array(
        [[[1.0, 2.0, 3.0, 0.5], [1.5, 2.5, 3.5, 2.0],
          [0.9, 1.9, 2.9, 0.6], [0.0, 0.0, 0.0, 0.0]],
         [[2.0, 3.0, 4.0, 0.7], [2.1, 3.1, 4.1, 0.8],
          [2.2, 3.2, 4.2, 0.9], [0.0, 0.0, 0.0, 0.0]]],
        dtype=jnp.float32,
    )
    npts_spec = jnp.array([3, 3], dtype=jnp.int32)
    out_spec = jax.block_until_ready(mean_vfe(voxels_spec, npts_spec))
    assert jnp.allclose(out_spec, _ref_mean_vfe(voxels_spec, npts_spec),
                        atol=1e-5, rtol=1e-5)

    # (3) Multi-step grid with a ragged tail block (packed layout, g=4,
    #     rows=75, tile_rows=16 -> 5 grid steps, last one masked).
    n3 = 300
    vox3 = jax.random.normal(
        k3v, (n3, max_points, num_point_features), dtype=jnp.float32
    )
    npts3 = jax.random.randint(k3n, (n3,), 1, max_points + 1, dtype=jnp.int32)
    out3 = jax.block_until_ready(mean_vfe(vox3, npts3, tile_rows=16))
    assert jnp.allclose(out3, _ref_mean_vfe(vox3, npts3), atol=1e-5, rtol=1e-5)

    # (4) Prime N exercises the g=1 fallback (no packing possible).
    n4 = 13
    vox4 = jax.random.normal(
        k4v, (n4, max_points, num_point_features), dtype=jnp.float32
    )
    npts4 = jax.random.randint(k4n, (n4,), 1, max_points + 1, dtype=jnp.int32)
    out4 = jax.block_until_ready(mean_vfe(vox4, npts4))
    assert jnp.allclose(out4, _ref_mean_vfe(vox4, npts4), atol=1e-5, rtol=1e-5)

    print("KERNEL_OK")
</pallas_src>

<mosaic_0001>
module attributes {stable_mosaic.version = 11 : i64} {
  func.func @_mean_vfe_kernel(%arg0: i32, %arg1: memref<1x512xf32, #tpu.memory_space<vmem>>, %arg2: memref<1x16xi32, #tpu.memory_space<vmem>>, %arg3: memref<1x64xf32, #tpu.memory_space<vmem>>) attributes {dimension_semantics = [#tpu.dimension_semantics<parallel>], iteration_bounds = array<i64: 1>, scalar_prefetch = 0 : i64, scratch_operands = 0 : i64, tpu.core_type = #tpu.core_type<tc>, window_params = [{transform_indices = @transform_0, window_bounds = array<i64: 1, 512>}, {transform_indices = @transform_1, window_bounds = array<i64: 1, 16>}, {transform_indices = @transform_2, window_bounds = array<i64: 1, 64>}]} {
    %c0 = arith.constant 0 : index
    %c0_0 = arith.constant 0 : index
    %0 = vector.load %arg2[%c0, %c0_0] : memref<1x16xi32, #tpu.memory_space<vmem>>, vector<1x16xi32>
    %1 = arith.sitofp %0 : vector<1x16xi32> to vector<1x16xf32>
    %cst = arith.constant 1.000000e+00 : f32
    %2 = vector.broadcast %cst : f32 to vector<1x16xf32>
    %3 = arith.maximumf %1, %2 : vector<1x16xf32>
    %c0_1 = arith.constant 0 : index
    %c0_2 = arith.constant 0 : index
    %4 = vector.load %arg1[%c0_1, %c0_2] : memref<1x512xf32, #tpu.memory_space<vmem>>, vector<1x4xf32>
    %c0_3 = arith.constant 0 : index
    %c4 = arith.constant 4 : index
    %5 = vector.load %arg1[%c0_3, %c4] : memref<1x512xf32, #tpu.memory_space<vmem>>, vector<1x4xf32>
    %6 = arith.addf %4, %5 : vector<1x4xf32>
    %c0_4 = arith.constant 0 : index
    %c8 = arith.constant 8 : index
    %7 = vector.load %arg1[%c0_4, %c8] : memref<1x512xf32, #tpu.memory_space<vmem>>, vector<1x4xf32>
    %8 = arith.addf %6, %7 : vector<1x4xf32>
    %c0_5 = arith.constant 0 : index
    %c12 = arith.constant 12 : index
    %9 = vector.load %arg1[%c0_5, %c12] : memref<1x512xf32, #tpu.memory_space<vmem>>, vector<1x4xf32>
    %10 = arith.addf %8, %9 : vector<1x4xf32>
    %c0_6 = arith.constant 0 : index
    %c16 = arith.constant 16 : index
    %11 = vector.load %arg1[%c0_6, %c16] : memref<1x512xf32, #tpu.memory_space<vmem>>, vector<1x4xf32>
    %12 = arith.addf %10, %11 : vector<1x4xf32>
    %c0_7 = arith.constant 0 : index
    %c20 = arith.constant 20 : index
    %13 = vector.load %arg1[%c0_7, %c20] : memref<1x512xf32, #tpu.memory_space<vmem>>, vector<1x4xf32>
    %14 = arith.addf %12, %13 : vector<1x4xf32>
    %c0_8 = arith.constant 0 : index
    %c24 = arith.constant 24 : index
    %15 = vector.load %arg1[%c0_8, %c24] : memref<1x512xf32, #tpu.memory_space<vmem>>, vector<1x4xf32>
    %16 = arith.addf %14, %15 : vector<1x4xf32>
    %c0_9 = arith.constant 0 : index
    %c28 = arith.constant 28 : index
    %17 = vector.load %arg1[%c0_9, %c28] : memref<1x512xf32, #tpu.memory_space<vmem>>, vector<1x4xf32>
    %18 = arith.addf %16, %17 : vector<1x4xf32>
    %19 = vector.extract_strided_slice %3 {offsets = [0, 0], sizes = [1, 1], strides = [1, 1]} : vector<1x16xf32> to vector<1x1xf32>
    %20 = vector.broadcast %19 : vector<1x1xf32> to vector<1x4xf32>
    %21 = arith.divf %18, %20 : vector<1x4xf32>
    %c0_10 = arith.constant 0 : index
    %c0_11 = arith.constant 0 : index
    %22 = vector.load %arg3[%c0_10, %c0_11] : memref<1x64xf32, #tpu.memory_space<vmem>>, vector<1x4xf32>
    tpu.vector_store %arg3[%c0_10, %c0_11], %21 {strides = array<i32>} : memref<1x64xf32, #tpu.memory_space<vmem>>, vector<1x4xf32>,
    %c0_12 = arith.constant 0 : index
    %c32 = arith.constant 32 : index
    %23 = vector.load %arg1[%c0_12, %c32] : memref<1x512xf32, #tpu.memory_space<vmem>>, vector<1x4xf32>
    %c0_13 = arith.constant 0 : index
    %c36 = arith.constant 36 : index
    %24 = vector.load %arg1[%c0_13, %c36] : memref<1x512xf32, #tpu.memory_space<vmem>>, vector<1x4xf32>
    %25 = arith.addf %23, %24 : vector<1x4xf32>
    %c0_14 = arith.constant 0 : index
    %c40 = arith.constant 40 : index
    %26 = vector.load %arg1[%c0_14, %c40] : memref<1x512xf32, #tpu.memory_space<vmem>>, vector<1x4xf32>
    %27 = arith.addf %25, %26 : vector<1x4xf32>
    %c0_15 = arith.constant 0 : index
    %c44 = arith.constant 44 : index
    %28 = vector.load %arg1[%c0_15, %c44] : memref<1x512xf32, #tpu.memory_space<vmem>>, vector<1x4xf32>
    %29 = arith.addf %27, %28 : vector<1x4xf32>
    %c0_16 = arith.constant 0 : index
    %c48 = arith.constant 48 : index
    %30 = vector.load %arg1[%c0_16, %c48] : memref<1x512xf32, #tpu.memory_space<vmem>>, vector<1x4xf32>
    %31 = arith.addf %29, %30 : vector<1x4xf32>
    %c0_17 = arith.constant 0 : index
    %c52 = arith.constant 52 : index
    %32 = vector.load %arg1[%c0_17, %c52] : memref<1x512xf32, #tpu.memory_space<vmem>>, vector<1x4xf32>
    %33 = arith.addf %31, %32 : vector<1x4xf32>
    %c0_18 = arith.constant 0 : index
    %c56 = arith.constant 56 : index
    %34 = vector.load %arg1[%c0_18, %c56] : memref<1x512xf32, #tpu.memory_space<vmem>>, vector<1x4xf32>
    %35 = arith.addf %33, %34 : vector<1x4xf32>
    %c0_19 = arith.constant 0 : index
    %c60 = arith.constant 60 : index
    %36 = vector.load %arg1[%c0_19, %c60] : memref<1x512xf32, #tpu.memory_space<vmem>>, vector<1x4xf32>
    %37 = arith.addf %35, %36 : vector<1x4xf32>
    %38 = vector.extract_strided_slice %3 {offsets = [0, 1], sizes = [1, 1], strides = [1, 1]} : vector<1x16xf32> to vector<1x1xf32>
    %39 = vector.broadcast %38 : vector<1x1xf32> to vector<1x4xf32>
    %40 = arith.divf %37, %39 : vector<1x4xf32>
    %c0_20 = arith.constant 0 : index
    %c4_21 = arith.constant 4 : index
    %41 = vector.load %arg3[%c0_20, %c4_21] : memref<1x64xf32, #tpu.memory_space<vmem>>, vector<1x4xf32>
    tpu.vector_store %arg3[%c0_20, %c4_21], %40 {strides = array<i32>} : memref<1x64xf32, #tpu.memory_space<vmem>>, vector<1x4xf32>,
    %c0_22 = arith.constant 0 : index
    %c64 = arith.constant 64 : index
    %42 = vector.load %arg1[%c0_22, %c64] : memref<1x512xf32, #tpu.memory_space<vmem>>, vector<1x4xf32>
    %c0_23 = arith.constant 0 : index
    %c68 = arith.constant 68 : index
    %43 = vector.load %arg1[%c0_23, %c68] : memref<1x512xf32, #tpu.memory_space<vmem>>, vector<1x4xf32>
    %44 = arith.addf %42, %43 : vector<1x4xf32>
    %c0_24 = arith.constant 0 : index
    %c72 = arith.constant 72 : index
    %45 = vector.load %arg1[%c0_24, %c72] : memref<1x512xf32, #tpu.memory_space<vmem>>, vector<1x4xf32>
    %46 = arith.addf %44, %45 : vector<1x4xf32>
    %c0_25 = arith.constant 0 : index
    %c76 = arith.constant 76 : index
    %47 = vector.load %arg1[%c0_25, %c76] : memref<1x512xf32, #tpu.memory_space<vmem>>, vector<1x4xf32>
    %48 = arith.addf %46, %47 : vector<1x4xf32>
    %c0_26 = arith.constant 0 : index
    %c80 = arith.constant 80 : index
    %49 = vector.load %arg1[%c0_26, %c80] : memref<1x512xf32, #tpu.memory_space<vmem>>, vector<1x4xf32>
    %50 = arith.addf %48, %49 : vector<1x4xf32>
    %c0_27 = arith.constant 0 : index
    %c84 = arith.constant 84 : index
    %51 = vector.load %arg1[%c0_27, %c84] : memref<1x512xf32, #tpu.memory_space<vmem>>, vector<1x4xf32>
    %52 = arith.addf %50, %51 : vector<1x4xf32>
    %c0_28 = arith.constant 0 : index
    %c88 = arith.constant 88 : index
    %53 = vector.load %arg1[%c0_28, %c88] : memref<1x512xf32, #tpu.memory_space<vmem>>, vector<1x4xf32>
    %54 = arith.addf %52, %53 : vector<1x4xf32>
    %c0_29 = arith.constant 0 : index
    %c92 = arith.constant 92 : index
    %55 = vector.load %arg1[%c0_29, %c92] : memref<1x512xf32, #tpu.memory_space<vmem>>, vector<1x4xf32>
    %56 = arith.addf %54, %55 : vector<1x4xf32>
    %57 = vector.extract_strided_slice %3 {offsets = [0, 2], sizes = [1, 1], strides = [1, 1]} : vector<1x16xf32> to vector<1x1xf32>
    %58 = vector.broadcast %57 : vector<1x1xf32> to vector<1x4xf32>
    %59 = arith.divf %56, %58 : vector<1x4xf32>
    %c0_30 = arith.constant 0 : index
    %c8_31 = arith.constant 8 : index
    %60 = vector.load %arg3[%c0_30, %c8_31] : memref<1x64xf32, #tpu.memory_space<vmem>>, vector<1x4xf32>
    tpu.vector_store %arg3[%c0_30, %c8_31], %59 {strides = array<i32>} : memref<1x64xf32, #tpu.memory_space<vmem>>, vector<1x4xf32>,
    %c0_32 = arith.constant 0 : index
    %c96 = arith.constant 96 : index
    %61 = vector.load %arg1[%c0_32, %c96] : memref<1x512xf32, #tpu.memory_space<vmem>>, vector<1x4xf32>
    %c0_33 = arith.constant 0 : index
    %c100 = arith.constant 100 : index
    %62 = vector.load %arg1[%c0_33, %c100] : memref<1x512xf32, #tpu.memory_space<vmem>>, vector<1x4xf32>
    %63 = arith.addf %61, %62 : vector<1x4xf32>
    %c0_34 = arith.constant 0 : index
    %c104 = arith.constant 104 : index
    %64 = vector.load %arg1[%c0_34, %c104] : memref<1x512xf32, #tpu.memory_space<vmem>>, vector<1x4xf32>
    %65 = arith.addf %63, %64 : vector<1x4xf32>
    %c0_35 = arith.constant 0 : index
    %c108 = arith.constant 108 : index
    %66 = vector.load %arg1[%c0_35, %c108] : memref<1x512xf32, #tpu.memory_space<vmem>>, vector<1x4xf32>
    %67 = arith.addf %65, %66 : vector<1x4xf32>
    %c0_36 = arith.constant 0 : index
    %c112 = arith.constant 112 : index
    %68 = vector.load %arg1[%c0_36, %c112] : memref<1x512xf32, #tpu.memory_space<vmem>>, vector<1x4xf32>
    %69 = arith.addf %67, %68 : vector<1x4xf32>
    %c0_37 = arith.constant 0 : index
    %c116 = arith.constant 116 : index
    %70 = vector.load %arg1[%c0_37, %c116] : memref<1x512xf32, #tpu.memory_space<vmem>>, vector<1x4xf32>
    %71 = arith.addf %69, %70 : vector<1x4xf32>
    %c0_38 = arith.constant 0 : index
    %c120 = arith.constant 120 : index
    %72 = vector.load %arg1[%c0_38, %c120] : memref<1x512xf32, #tpu.memory_space<vmem>>, vector<1x4xf32>
    %73 = arith.addf %71, %72 : vector<1x4xf32>
    %c0_39 = arith.constant 0 : index
    %c124 = arith.constant 124 : index
    %74 = vector.load %arg1[%c0_39, %c124] : memref<1x512xf32, #tpu.memory_space<vmem>>, vector<1x4xf32>
    %75 = arith.addf %73, %74 : vector<1x4xf32>
    %76 = vector.extract_strided_slice %3 {offsets = [0, 3], sizes = [1, 1], strides = [1, 1]} : vector<1x16xf32> to vector<1x1xf32>
    %77 = vector.broadcast %76 : vector<1x1xf32> to vector<1x4xf32>
    %78 = arith.divf %75, %77 : vector<1x4xf32>
    %c0_40 = arith.constant 0 : index
    %c12_41 = arith.constant 12 : index
    %79 = vector.load %arg3[%c0_40, %c12_41] : memref<1x64xf32, #tpu.memory_space<vmem>>, vector<1x4xf32>
    tpu.vector_store %arg3[%c0_40, %c12_41], %78 {strides = array<i32>} : memref<1x64xf32, #tpu.memory_space<vmem>>, vector<1x4xf32>,
    %c0_42 = arith.constant 0 : index
    %c128 = arith.constant 128 : index
    %80 = vector.load %arg1[%c0_42, %c128] : memref<1x512xf32, #tpu.memory_space<vmem>>, vector<1x4xf32>
    %c0_43 = arith.constant 0 : index
    %c132 = arith.constant 132 : index
    %81 = vector.load %arg1[%c0_43, %c132] : memref<1x512xf32, #tpu.memory_space<vmem>>, vector<1x4xf32>
    %82 = arith.addf %80, %81 : vector<1x4xf32>
    %c0_44 = arith.constant 0 : index
    %c136 = arith.constant 136 : index
    %83 = vector.load %arg1[%c0_44, %c136] : memref<1x512xf32, #tpu.memory_space<vmem>>, vector<1x4xf32>
    %84 = arith.addf %82, %83 : vector<1x4xf32>
    %c0_45 = arith.constant 0 : index
    %c140 = arith.constant 140 : index
    %85 = vector.load %arg1[%c0_45, %c140] : memref<1x512xf32, #tpu.memory_space<vmem>>, vector<1x4xf32>
    %86 = arith.addf %84, %85 : vector<1x4xf32>
    %c0_46 = arith.constant 0 : index
    %c144 = arith.constant 144 : index
    %87 = vector.load %arg1[%c0_46, %c144] : memref<1x512xf32, #tpu.memory_space<vmem>>, vector<1x4xf32>
    %88 = arith.addf %86, %87 : vector<1x4xf32>
    %c0_47 = arith.constant 0 : index
    %c148 = arith.constant 148 : index
    %89 = vector.load %arg1[%c0_47, %c148] : memref<1x512xf32, #tpu.memory_space<vmem>>, vector<1x4xf32>
    %90 = arith.addf %88, %89 : vector<1x4xf32>
    %c0_48 = arith.constant 0 : index
    %c152 = arith.constant 152 : index
    %91 = vector.load %arg1[%c0_48, %c152] : memref<1x512xf32, #tpu.memory_space<vmem>>, vector<1x4xf32>
    %92 = arith.addf %90, %91 : vector<1x4xf32>
    %c0_49 = arith.constant 0 : index
    %c156 = arith.constant 156 : index
    %93 = vector.load %arg1[%c0_49, %c156] : memref<1x512xf32, #tpu.memory_space<vmem>>, vector<1x4xf32>
    %94 = arith.addf %92, %93 : vector<1x4xf32>
    %95 = vector.extract_strided_slice %3 {offsets = [0, 4], sizes = [1, 1], strides = [1, 1]} : vector<1x16xf32> to vector<1x1xf32>
    %96 = vector.broadcast %95 : vector<1x1xf32> to vector<1x4xf32>
    %97 = arith.divf %94, %96 : vector<1x4xf32>
    %c0_50 = arith.constant 0 : index
    %c16_51 = arith.constant 16 : index
    %98 = vector.load %arg3[%c0_50, %c16_51] : memref<1x64xf32, #tpu.memory_space<vmem>>, vector<1x4xf32>
    tpu.vector_store %arg3[%c0_50, %c16_51], %97 {strides = array<i32>} : memref<1x64xf32, #tpu.memory_space<vmem>>, vector<1x4xf32>,
    %c0_52 = arith.constant 0 : index
    %c160 = arith.constant 160 : index
    %99 = vector.load %arg1[%c0_52, %c160] : memref<1x512xf32, #tpu.memory_space<vmem>>, vector<1x4xf32>
    %c0_53 = arith.constant 0 : index
    %c164 = arith.constant 164 : index
    %100 = vector.load %arg1[%c0_53, %c164] : memref<1x512xf32, #tpu.memory_space<vmem>>, vector<1x4xf32>
    %101 = arith.addf %99, %100 : vector<1x4xf32>
    %c0_54 = arith.constant 0 : index
    %c168 = arith.constant 168 : index
    %102 = vector.load %arg1[%c0_54, %c168] : memref<1x512xf32, #tpu.memory_space<vmem>>, vector<1x4xf32>
    %103 = arith.addf %101, %102 : vector<1x4xf32>
    %c0_55 = arith.constant 0 : index
    %c172 = arith.constant 172 : index
    %104 = vector.load %arg1[%c0_55, %c172] : memref<1x512xf32, #tpu.memory_space<vmem>>, vector<1x4xf32>
    %105 = arith.addf %103, %104 : vector<1x4xf32>
    %c0_56 = arith.constant 0 : index
    %c176 = arith.constant 176 : index
    %106 = vector.load %arg1[%c0_56, %c176] : memref<1x512xf32, #tpu.memory_space<vmem>>, vector<1x4xf32>
    %107 = arith.addf %105, %106 : vector<1x4xf32>
    %c0_57 = arith.constant 0 : index
    %c180 = arith.constant 180 : index
    %108 = vector.load %arg1[%c0_57, %c180] : memref<1x512xf32, #tpu.memory_space<vmem>>, vector<1x4xf32>
    %109 = arith.addf %107, %108 : vector<1x4xf32>
    %c0_58 = arith.constant 0 : index
    %c184 = arith.constant 184 : index
    %110 = vector.load %arg1[%c0_58, %c184] : memref<1x512xf32, #tpu.memory_space<vmem>>, vector<1x4xf32>
    %111 = arith.addf %109, %110 : vector<1x4xf32>
    %c0_59 = arith.constant 0 : index
    %c188 = arith.constant 188 : index
    %112 = vector.load %arg1[%c0_59, %c188] : memref<1x512xf32, #tpu.memory_space<vmem>>, vector<1x4xf32>
    %113 = arith.addf %111, %112 : vector<1x4xf32>
    %114 = vector.extract_strided_slice %3 {offsets = [0, 5], sizes = [1, 1], strides = [1, 1]} : vector<1x16xf32> to vector<1x1xf32>
    %115 = vector.broadcast %114 : vector<1x1xf32> to vector<1x4xf32>
    %116 = arith.divf %113, %115 : vector<1x4xf32>
    %c0_60 = arith.constant 0 : index
    %c20_61 = arith.constant 20 : index
    %117 = vector.load %arg3[%c0_60, %c20_61] : memref<1x64xf32, #tpu.memory_space<vmem>>, vector<1x4xf32>
    tpu.vector_store %arg3[%c0_60, %c20_61], %116 {strides = array<i32>} : memref<1x64xf32, #tpu.memory_space<vmem>>, vector<1x4xf32>,
    %c0_62 = arith.constant 0 : index
    %c192 = arith.constant 192 : index
    %118 = vector.load %arg1[%c0_62, %c192] : memref<1x512xf32, #tpu.memory_space<vmem>>, vector<1x4xf32>
    %c0_63 = arith.constant 0 : index
    %c196 = arith.constant 196 : index
    %119 = vector.load %arg1[%c0_63, %c196] : memref<1x512xf32, #tpu.memory_space<vmem>>, vector<1x4xf32>
    %120 = arith.addf %118, %119 : vector<1x4xf32>
    %c0_64 = arith.constant 0 : index
    %c200 = arith.constant 200 : index
    %121 = vector.load %arg1[%c0_64, %c200] : memref<1x512xf32, #tpu.memory_space<vmem>>, vector<1x4xf32>
    %122 = arith.addf %120, %121 : vector<1x4xf32>
    %c0_65 = arith.constant 0 : index
    %c204 = arith.constant 204 : index
    %123 = vector.load %arg1[%c0_65, %c204] : memref<1x512xf32, #tpu.memory_space<vmem>>, vector<1x4xf32>
    %124 = arith.addf %122, %123 : vector<1x4xf32>
    %c0_66 = arith.constant 0 : index
    %c208 = arith.constant 208 : index
    %125 = vector.load %arg1[%c0_66, %c208] : memref<1x512xf32, #tpu.memory_space<vmem>>, vector<1x4xf32>
    %126 = arith.addf %124, %125 : vector<1x4xf32>
    %c0_67 = arith.constant 0 : index
    %c212 = arith.constant 212 : index
    %127 = vector.load %arg1[%c0_67, %c212] : memref<1x512xf32, #tpu.memory_space<vmem>>, vector<1x4xf32>
    %128 = arith.addf %126, %127 : vector<1x4xf32>
    %c0_68 = arith.constant 0 : index
    %c216 = arith.constant 216 : index
    %129 = vector.load %arg1[%c0_68, %c216] : memref<1x512xf32, #tpu.memory_space<vmem>>, vector<1x4xf32>
    %130 = arith.addf %128, %129 : vector<1x4xf32>
    %c0_69 = arith.constant 0 : index
    %c220 = arith.constant 220 : index
    %131 = vector.load %arg1[%c0_69, %c220] : memref<1x512xf32, #tpu.memory_space<vmem>>, vector<1x4xf32>
    %132 = arith.addf %130, %131 : vector<1x4xf32>
    %133 = vector.extract_strided_slice %3 {offsets = [0, 6], sizes = [1, 1], strides = [1, 1]} : vector<1x16xf32> to vector<1x1xf32>
    %134 = vector.broadcast %133 : vector<1x1xf32> to vector<1x4xf32>
    %135 = arith.divf %132, %134 : vector<1x4xf32>
    %c0_70 = arith.constant 0 : index
    %c24_71 = arith.constant 24 : index
    %136 = vector.load %arg3[%c0_70, %c24_71] : memref<1x64xf32, #tpu.memory_space<vmem>>, vector<1x4xf32>
    tpu.vector_store %arg3[%c0_70, %c24_71], %135 {strides = array<i32>} : memref<1x64xf32, #tpu.memory_space<vmem>>, vector<1x4xf32>,
    %c0_72 = arith.constant 0 : index
    %c224 = arith.constant 224 : index
    %137 = vector.load %arg1[%c0_72, %c224] : memref<1x512xf32, #tpu.memory_space<vmem>>, vector<1x4xf32>
    %c0_73 = arith.constant 0 : index
    %c228 = arith.constant 228 : index
    %138 = vector.load %arg1[%c0_73, %c228] : memref<1x512xf32, #tpu.memory_space<vmem>>, vector<1x4xf32>
    %139 = arith.addf %137, %138 : vector<1x4xf32>
    %c0_74 = arith.constant 0 : index
    %c232 = arith.constant 232 : index
    %140 = vector.load %arg1[%c0_74, %c232] : memref<1x512xf32, #tpu.memory_space<vmem>>, vector<1x4xf32>
    %141 = arith.addf %139, %140 : vector<1x4xf32>
    %c0_75 = arith.constant 0 : index
    %c236 = arith.constant 236 : index
    %142 = vector.load %arg1[%c0_75, %c236] : memref<1x512xf32, #tpu.memory_space<vmem>>, vector<1x4xf32>
    %143 = arith.addf %141, %142 : vector<1x4xf32>
    %c0_76 = arith.constant 0 : index
    %c240 = arith.constant 240 : index
    %144 = vector.load %arg1[%c0_76, %c240] : memref<1x512xf32, #tpu.memory_space<vmem>>, vector<1x4xf32>
    %145 = arith.addf %143, %144 : vector<1x4xf32>
    %c0_77 = arith.constant 0 : index
    %c244 = arith.constant 244 : index
    %146 = vector.load %arg1[%c0_77, %c244] : memref<1x512xf32, #tpu.memory_space<vmem>>, vector<1x4xf32>
    %147 = arith.addf %145, %146 : vector<1x4xf32>
    %c0_78 = arith.constant 0 : index
    %c248 = arith.constant 248 : index
    %148 = vector.load %arg1[%c0_78, %c248] : memref<1x512xf32, #tpu.memory_space<vmem>>, vector<1x4xf32>
    %149 = arith.addf %147, %148 : vector<1x4xf32>
    %c0_79 = arith.constant 0 : index
    %c252 = arith.constant 252 : index
    %150 = vector.load %arg1[%c0_79, %c252] : memref<1x512xf32, #tpu.memory_space<vmem>>, vector<1x4xf32>
    %151 = arith.addf %149, %150 : vector<1x4xf32>
    %152 = vector.extract_strided_slice %3 {offsets = [0, 7], sizes = [1, 1], strides = [1, 1]} : vector<1x16xf32> to vector<1x1xf32>
    %153 = vector.broadcast %152 : vector<1x1xf32> to vector<1x4xf32>
    %154 = arith.divf %151, %153 : vector<1x4xf32>
    %c0_80 = arith.constant 0 : index
    %c28_81 = arith.constant 28 : index
    %155 = vector.load %arg3[%c0_80, %c28_81] : memref<1x64xf32, #tpu.memory_space<vmem>>, vector<1x4xf32>
    tpu.vector_store %arg3[%c0_80, %c28_81], %154 {strides = array<i32>} : memref<1x64xf32, #tpu.memory_space<vmem>>, vector<1x4xf32>,
    %c0_82 = arith.constant 0 : index
    %c256 = arith.constant 256 : index
    %156 = vector.load %arg1[%c0_82, %c256] : memref<1x512xf32, #tpu.memory_space<vmem>>, vector<1x4xf32>
    %c0_83 = arith.constant 0 : index
    %c260 = arith.constant 260 : index
    %157 = vector.load %arg1[%c0_83, %c260] : memref<1x512xf32, #tpu.memory_space<vmem>>, vector<1x4xf32>
    %158 = arith.addf %156, %157 : vector<1x4xf32>
    %c0_84 = arith.constant 0 : index
    %c264 = arith.constant 264 : index
    %159 = vector.load %arg1[%c0_84, %c264] : memref<1x512xf32, #tpu.memory_space<vmem>>, vector<1x4xf32>
    %160 = arith.addf %158, %159 : vector<1x4xf32>
    %c0_85 = arith.constant 0 : index
    %c268 = arith.constant 268 : index
    %161 = vector.load %arg1[%c0_85, %c268] : memref<1x512xf32, #tpu.memory_space<vmem>>, vector<1x4xf32>
    %162 = arith.addf %160, %161 : vector<1x4xf32>
    %c0_86 = arith.constant 0 : index
    %c272 = arith.constant 272 : index
    %163 = vector.load %arg1[%c0_86, %c272] : memref<1x512xf32, #tpu.memory_space<vmem>>, vector<1x4xf32>
    %164 = arith.addf %162, %163 : vector<1x4xf32>
    %c0_87 = arith.constant 0 : index
    %c276 = arith.constant 276 : index
    %165 = vector.load %arg1[%c0_87, %c276] : memref<1x512xf32, #tpu.memory_space<vmem>>, vector<1x4xf32>
    %166 = arith.addf %164, %165 : vector<1x4xf32>
    %c0_88 = arith.constant 0 : index
    %c280 = arith.constant 280 : index
    %167 = vector.load %arg1[%c0_88, %c280] : memref<1x512xf32, #tpu.memory_space<vmem>>, vector<1x4xf32>
    %168 = arith.addf %166, %167 : vector<1x4xf32>
    %c0_89 = arith.constant 0 : index
    %c284 = arith.constant 284 : index
    %169 = vector.load %arg1[%c0_89, %c284] : memref<1x512xf32, #tpu.memory_space<vmem>>, vector<1x4xf32>
    %170 = arith.addf %168, %169 : vector<1x4xf32>
    %171 = vector.extract_strided_slice %3 {offsets = [0, 8], sizes = [1, 1], strides = [1, 1]} : vector<1x16xf32> to vector<1x1xf32>
    %172 = vector.broadcast %171 : vector<1x1xf32> to vector<1x4xf32>
    %173 = arith.divf %170, %172 : vector<1x4xf32>
    %c0_90 = arith.constant 0 : index
    %c32_91 = arith.constant 32 : index
    %174 = vector.load %arg3[%c0_90, %c32_91] : memref<1x64xf32, #tpu.memory_space<vmem>>, vector<1x4xf32>
    tpu.vector_store %arg3[%c0_90, %c32_91], %173 {strides = array<i32>} : memref<1x64xf32, #tpu.memory_space<vmem>>, vector<1x4xf32>,
    %c0_92 = arith.constant 0 : index
    %c288 = arith.constant 288 : index
    %175 = vector.load %arg1[%c0_92, %c288] : memref<1x512xf32, #tpu.memory_space<vmem>>, vector<1x4xf32>
    %c0_93 = arith.constant 0 : index
    %c292 = arith.constant 292 : index
    %176 = vector.load %arg1[%c0_93, %c292] : memref<1x512xf32, #tpu.memory_space<vmem>>, vector<1x4xf32>
    %177 = arith.addf %175, %176 : vector<1x4xf32>
    %c0_94 = arith.constant 0 : index
    %c296 = arith.constant 296 : index
    %178 = vector.load %arg1[%c0_94, %c296] : memref<1x512xf32, #tpu.memory_space<vmem>>, vector<1x4xf32>
    %179 = arith.addf %177, %178 : vector<1x4xf32>
    %c0_95 = arith.constant 0 : index
    %c300 = arith.constant 300 : index
    %180 = vector.load %arg1[%c0_95, %c300] : memref<1x512xf32, #tpu.memory_space<vmem>>, vector<1x4xf32>
    %181 = arith.addf %179, %180 : vector<1x4xf32>
    %c0_96 = arith.constant 0 : index
    %c304 = arith.constant 304 : index
    %182 = vector.load %arg1[%c0_96, %c304] : memref<1x512xf32, #tpu.memory_space<vmem>>, vector<1x4xf32>
    %183 = arith.addf %181, %182 : vector<1x4xf32>
    %c0_97 = arith.constant 0 : index
    %c308 = arith.constant 308 : index
    %184 = vector.load %arg1[%c0_97, %c308] : memref<1x512xf32, #tpu.memory_space<vmem>>, vector<1x4xf32>
    %185 = arith.addf %183, %184 : vector<1x4xf32>
    %c0_98 = arith.constant 0 : index
    %c312 = arith.constant 312 : index
    %186 = vector.load %arg1[%c0_98, %c312] : memref<1x512xf32, #tpu.memory_space<vmem>>, vector<1x4xf32>
    %187 = arith.addf %185, %186 : vector<1x4xf32>
    %c0_99 = arith.constant 0 : index
    %c316 = arith.constant 316 : index
    %188 = vector.load %arg1[%c0_99, %c316] : memref<1x512xf32, #tpu.memory_space<vmem>>, vector<1x4xf32>
    %189 = arith.addf %187, %188 : vector<1x4xf32>
    %190 = vector.extract_strided_slice %3 {offsets = [0, 9], sizes = [1, 1], strides = [1, 1]} : vector<1x16xf32> to vector<1x1xf32>
    %191 = vector.broadcast %190 : vector<1x1xf32> to vector<1x4xf32>
    %192 = arith.divf %189, %191 : vector<1x4xf32>
    %c0_100 = arith.constant 0 : index
    %c36_101 = arith.constant 36 : index
    %193 = vector.load %arg3[%c0_100, %c36_101] : memref<1x64xf32, #tpu.memory_space<vmem>>, vector<1x4xf32>
    tpu.vector_store %arg3[%c0_100, %c36_101], %192 {strides = array<i32>} : memref<1x64xf32, #tpu.memory_space<vmem>>, vector<1x4xf32>,
    %c0_102 = arith.constant 0 : index
    %c320 = arith.constant 320 : index
    %194 = vector.load %arg1[%c0_102, %c320] : memref<1x512xf32, #tpu.memory_space<vmem>>, vector<1x4xf32>
    %c0_103 = arith.constant 0 : index
    %c324 = arith.constant 324 : index
    %195 = vector.load %arg1[%c0_103, %c324] : memref<1x512xf32, #tpu.memory_space<vmem>>, vector<1x4xf32>
    %196 = arith.addf %194, %195 : vector<1x4xf32>
    %c0_104 = arith.constant 0 : index
    %c328 = arith.constant 328 : index
    %197 = vector.load %arg1[%c0_104, %c328] : memref<1x512xf32, #tpu.memory_space<vmem>>, vector<1x4xf32>
    %198 = arith.addf %196, %197 : vector<1x4xf32>
    %c0_105 = arith.constant 0 : index
    %c332 = arith.constant 332 : index
    %199 = vector.load %arg1[%c0_105, %c332] : memref<1x512xf32, #tpu.memory_space<vmem>>, vector<1x4xf32>
    %200 = arith.addf %198, %199 : vector<1x4xf32>
    %c0_106 = arith.constant 0 : index
    %c336 = arith.constant 336 : index
    %201 = vector.load %arg1[%c0_106, %c336] : memref<1x512xf32, #tpu.memory_space<vmem>>, vector<1x4xf32>
    %202 = arith.addf %200, %201 : vector<1x4xf32>
    %c0_107 = arith.constant 0 : index
    %c340 = arith.constant 340 : index
    %203 = vector.load %arg1[%c0_107, %c340] : memref<1x512xf32, #tpu.memory_space<vmem>>, vector<1x4xf32>
    %204 = arith.addf %202, %203 : vector<1x4xf32>
    %c0_108 = arith.constant 0 : index
    %c344 = arith.constant 344 : index
    %205 = vector.load %arg1[%c0_108, %c344] : memref<1x512xf32, #tpu.memory_space<vmem>>, vector<1x4xf32>
    %206 = arith.addf %204, %205 : vector<1x4xf32>
    %c0_109 = arith.constant 0 : index
    %c348 = arith.constant 348 : index
    %207 = vector.load %arg1[%c0_109, %c348] : memref<1x512xf32, #tpu.memory_space<vmem>>, vector<1x4xf32>
    %208 = arith.addf %206, %207 : vector<1x4xf32>
    %209 = vector.extract_strided_slice %3 {offsets = [0, 10], sizes = [1, 1], strides = [1, 1]} : vector<1x16xf32> to vector<1x1xf32>
    %210 = vector.broadcast %209 : vector<1x1xf32> to vector<1x4xf32>
    %211 = arith.divf %208, %210 : vector<1x4xf32>
    %c0_110 = arith.constant 0 : index
    %c40_111 = arith.constant 40 : index
    %212 = vector.load %arg3[%c0_110, %c40_111] : memref<1x64xf32, #tpu.memory_space<vmem>>, vector<1x4xf32>
    tpu.vector_store %arg3[%c0_110, %c40_111], %211 {strides = array<i32>} : memref<1x64xf32, #tpu.memory_space<vmem>>, vector<1x4xf32>,
    %c0_112 = arith.constant 0 : index
    %c352 = arith.constant 352 : index
    %213 = vector.load %arg1[%c0_112, %c352] : memref<1x512xf32, #tpu.memory_space<vmem>>, vector<1x4xf32>
    %c0_113 = arith.constant 0 : index
    %c356 = arith.constant 356 : index
    %214 = vector.load %arg1[%c0_113, %c356] : memref<1x512xf32, #tpu.memory_space<vmem>>, vector<1x4xf32>
    %215 = arith.addf %213, %214 : vector<1x4xf32>
    %c0_114 = arith.constant 0 : index
    %c360 = arith.constant 360 : index
    %216 = vector.load %arg1[%c0_114, %c360] : memref<1x512xf32, #tpu.memory_space<vmem>>, vector<1x4xf32>
    %217 = arith.addf %215, %216 : vector<1x4xf32>
    %c0_115 = arith.constant 0 : index
    %c364 = arith.constant 364 : index
    %218 = vector.load %arg1[%c0_115, %c364] : memref<1x512xf32, #tpu.memory_space<vmem>>, vector<1x4xf32>
    %219 = arith.addf %217, %218 : vector<1x4xf32>
    %c0_116 = arith.constant 0 : index
    %c368 = arith.constant 368 : index
    %220 = vector.load %arg1[%c0_116, %c368] : memref<1x512xf32, #tpu.memory_space<vmem>>, vector<1x4xf32>
    %221 = arith.addf %219, %220 : vector<1x4xf32>
    %c0_117 = arith.constant 0 : index
    %c372 = arith.constant 372 : index
    %222 = vector.load %arg1[%c0_117, %c372] : memref<1x512xf32, #tpu.memory_space<vmem>>, vector<1x4xf32>
    %223 = arith.addf %221, %222 : vector<1x4xf32>
    %c0_118 = arith.constant 0 : index
    %c376 = arith.constant 376 : index
    %224 = vector.load %arg1[%c0_118, %c376] : memref<1x512xf32, #tpu.memory_space<vmem>>, vector<1x4xf32>
    %225 = arith.addf %223, %224 : vector<1x4xf32>
    %c0_119 = arith.constant 0 : index
    %c380 = arith.constant 380 : index
    %226 = vector.load %arg1[%c0_119, %c380] : memref<1x512xf32, #tpu.memory_space<vmem>>, vector<1x4xf32>
    %227 = arith.addf %225, %226 : vector<1x4xf32>
    %228 = vector.extract_strided_slice %3 {offsets = [0, 11], sizes = [1, 1], strides = [1, 1]} : vector<1x16xf32> to vector<1x1xf32>
    %229 = vector.broadcast %228 : vector<1x1xf32> to vector<1x4xf32>
    %230 = arith.divf %227, %229 : vector<1x4xf32>
    %c0_120 = arith.constant 0 : index
    %c44_121 = arith.constant 44 : index
    %231 = vector.load %arg3[%c0_120, %c44_121] : memref<1x64xf32, #tpu.memory_space<vmem>>, vector<1x4xf32>
    tpu.vector_store %arg3[%c0_120, %c44_121], %230 {strides = array<i32>} : memref<1x64xf32, #tpu.memory_space<vmem>>, vector<1x4xf32>,
    %c0_122 = arith.constant 0 : index
    %c384 = arith.constant 384 : index
    %232 = vector.load %arg1[%c0_122, %c384] : memref<1x512xf32, #tpu.memory_space<vmem>>, vector<1x4xf32>
    %c0_123 = arith.constant 0 : index
    %c388 = arith.constant 388 : index
    %233 = vector.load %arg1[%c0_123, %c388] : memref<1x512xf32, #tpu.memory_space<vmem>>, vector<1x4xf32>
    %234 = arith.addf %232, %233 : vector<1x4xf32>
    %c0_124 = arith.constant 0 : index
    %c392 = arith.constant 392 : index
    %235 = vector.load %arg1[%c0_124, %c392] : memref<1x512xf32, #tpu.memory_space<vmem>>, vector<1x4xf32>
    %236 = arith.addf %234, %235 : vector<1x4xf32>
    %c0_125 = arith.constant 0 : index
    %c396 = arith.constant 396 : index
    %237 = vector.load %arg1[%c0_125, %c396] : memref<1x512xf32, #tpu.memory_space<vmem>>, vector<1x4xf32>
    %238 = arith.addf %236, %237 : vector<1x4xf32>
    %c0_126 = arith.constant 0 : index
    %c400 = arith.constant 400 : index
    %239 = vector.load %arg1[%c0_126, %c400] : memref<1x512xf32, #tpu.memory_space<vmem>>, vector<1x4xf32>
    %240 = arith.addf %238, %239 : vector<1x4xf32>
    %c0_127 = arith.constant 0 : index
    %c404 = arith.constant 404 : index
    %241 = vector.load %arg1[%c0_127, %c404] : memref<1x512xf32, #tpu.memory_space<vmem>>, vector<1x4xf32>
    %242 = arith.addf %240, %241 : vector<1x4xf32>
    %c0_128 = arith.constant 0 : index
    %c408 = arith.constant 408 : index
    %243 = vector.load %arg1[%c0_128, %c408] : memref<1x512xf32, #tpu.memory_space<vmem>>, vector<1x4xf32>
    %244 = arith.addf %242, %243 : vector<1x4xf32>
    %c0_129 = arith.constant 0 : index
    %c412 = arith.constant 412 : index
    %245 = vector.load %arg1[%c0_129, %c412] : memref<1x512xf32, #tpu.memory_space<vmem>>, vector<1x4xf32>
    %246 = arith.addf %244, %245 : vector<1x4xf32>
    %247 = vector.extract_strided_slice %3 {offsets = [0, 12], sizes = [1, 1], strides = [1, 1]} : vector<1x16xf32> to vector<1x1xf32>
    %248 = vector.broadcast %247 : vector<1x1xf32> to vector<1x4xf32>
    %249 = arith.divf %246, %248 : vector<1x4xf32>
    %c0_130 = arith.constant 0 : index
    %c48_131 = arith.constant 48 : index
    %250 = vector.load %arg3[%c0_130, %c48_131] : memref<1x64xf32, #tpu.memory_space<vmem>>, vector<1x4xf32>
    tpu.vector_store %arg3[%c0_130, %c48_131], %249 {strides = array<i32>} : memref<1x64xf32, #tpu.memory_space<vmem>>, vector<1x4xf32>,
    %c0_132 = arith.constant 0 : index
    %c416 = arith.constant 416 : index
    %251 = vector.load %arg1[%c0_132, %c416] : memref<1x512xf32, #tpu.memory_space<vmem>>, vector<1x4xf32>
    %c0_133 = arith.constant 0 : index
    %c420 = arith.constant 420 : index
    %252 = vector.load %arg1[%c0_133, %c420] : memref<1x512xf32, #tpu.memory_space<vmem>>, vector<1x4xf32>
    %253 = arith.addf %251, %252 : vector<1x4xf32>
    %c0_134 = arith.constant 0 : index
    %c424 = arith.constant 424 : index
    %254 = vector.load %arg1[%c0_134, %c424] : memref<1x512xf32, #tpu.memory_space<vmem>>, vector<1x4xf32>
    %255 = arith.addf %253, %254 : vector<1x4xf32>
    %c0_135 = arith.constant 0 : index
    %c428 = arith.constant 428 : index
    %256 = vector.load %arg1[%c0_135, %c428] : memref<1x512xf32, #tpu.memory_space<vmem>>, vector<1x4xf32>
    %257 = arith.addf %255, %256 : vector<1x4xf32>
    %c0_136 = arith.constant 0 : index
    %c432 = arith.constant 432 : index
    %258 = vector.load %arg1[%c0_136, %c432] : memref<1x512xf32, #tpu.memory_space<vmem>>, vector<1x4xf32>
    %259 = arith.addf %257, %258 : vector<1x4xf32>
    %c0_137 = arith.constant 0 : index
    %c436 = arith.constant 436 : index
    %260 = vector.load %arg1[%c0_137, %c436] : memref<1x512xf32, #tpu.memory_space<vmem>>, vector<1x4xf32>
    %261 = arith.addf %259, %260 : vector<1x4xf32>
    %c0_138 = arith.constant 0 : index
    %c440 = arith.constant 440 : index
    %262 = vector.load %arg1[%c0_138, %c440] : memref<1x512xf32, #tpu.memory_space<vmem>>, vector<1x4xf32>
    %263 = arith.addf %261, %262 : vector<1x4xf32>
    %c0_139 = arith.constant 0 : index
    %c444 = arith.constant 444 : index
    %264 = vector.load %arg1[%c0_139, %c444] : memref<1x512xf32, #tpu.memory_space<vmem>>, vector<1x4xf32>
    %265 = arith.addf %263, %264 : vector<1x4xf32>
    %266 = vector.extract_strided_slice %3 {offsets = [0, 13], sizes = [1, 1], strides = [1, 1]} : vector<1x16xf32> to vector<1x1xf32>
    %267 = vector.broadcast %266 : vector<1x1xf32> to vector<1x4xf32>
    %268 = arith.divf %265, %267 : vector<1x4xf32>
    %c0_140 = arith.constant 0 : index
    %c52_141 = arith.constant 52 : index
    %269 = vector.load %arg3[%c0_140, %c52_141] : memref<1x64xf32, #tpu.memory_space<vmem>>, vector<1x4xf32>
    tpu.vector_store %arg3[%c0_140, %c52_141], %268 {strides = array<i32>} : memref<1x64xf32, #tpu.memory_space<vmem>>, vector<1x4xf32>,
    %c0_142 = arith.constant 0 : index
    %c448 = arith.constant 448 : index
    %270 = vector.load %arg1[%c0_142, %c448] : memref<1x512xf32, #tpu.memory_space<vmem>>, vector<1x4xf32>
    %c0_143 = arith.constant 0 : index
    %c452 = arith.constant 452 : index
    %271 = vector.load %arg1[%c0_143, %c452] : memref<1x512xf32, #tpu.memory_space<vmem>>, vector<1x4xf32>
    %272 = arith.addf %270, %271 : vector<1x4xf32>
    %c0_144 = arith.constant 0 : index
    %c456 = arith.constant 456 : index
    %273 = vector.load %arg1[%c0_144, %c456] : memref<1x512xf32, #tpu.memory_space<vmem>>, vector<1x4xf32>
    %274 = arith.addf %272, %273 : vector<1x4xf32>
    %c0_145 = arith.constant 0 : index
    %c460 = arith.constant 460 : index
    %275 = vector.load %arg1[%c0_145, %c460] : memref<1x512xf32, #tpu.memory_space<vmem>>, vector<1x4xf32>
    %276 = arith.addf %274, %275 : vector<1x4xf32>
    %c0_146 = arith.constant 0 : index
    %c464 = arith.constant 464 : index
    %277 = vector.load %arg1[%c0_146, %c464] : memref<1x512xf32, #tpu.memory_space<vmem>>, vector<1x4xf32>
    %278 = arith.addf %276, %277 : vector<1x4xf32>
    %c0_147 = arith.constant 0 : index
    %c468 = arith.constant 468 : index
    %279 = vector.load %arg1[%c0_147, %c468] : memref<1x512xf32, #tpu.memory_space<vmem>>, vector<1x4xf32>
    %280 = arith.addf %278, %279 : vector<1x4xf32>
    %c0_148 = arith.constant 0 : index
    %c472 = arith.constant 472 : index
    %281 = vector.load %arg1[%c0_148, %c472] : memref<1x512xf32, #tpu.memory_space<vmem>>, vector<1x4xf32>
    %282 = arith.addf %280, %281 : vector<1x4xf32>
    %c0_149 = arith.constant 0 : index
    %c476 = arith.constant 476 : index
    %283 = vector.load %arg1[%c0_149, %c476] : memref<1x512xf32, #tpu.memory_space<vmem>>, vector<1x4xf32>
    %284 = arith.addf %282, %283 : vector<1x4xf32>
    %285 = vector.extract_strided_slice %3 {offsets = [0, 14], sizes = [1, 1], strides = [1, 1]} : vector<1x16xf32> to vector<1x1xf32>
    %286 = vector.broadcast %285 : vector<1x1xf32> to vector<1x4xf32>
    %287 = arith.divf %284, %286 : vector<1x4xf32>
    %c0_150 = arith.constant 0 : index
    %c56_151 = arith.constant 56 : index
    %288 = vector.load %arg3[%c0_150, %c56_151] : memref<1x64xf32, #tpu.memory_space<vmem>>, vector<1x4xf32>
    tpu.vector_store %arg3[%c0_150, %c56_151], %287 {strides = array<i32>} : memref<1x64xf32, #tpu.memory_space<vmem>>, vector<1x4xf32>,
    %c0_152 = arith.constant 0 : index
    %c480 = arith.constant 480 : index
    %289 = vector.load %arg1[%c0_152, %c480] : memref<1x512xf32, #tpu.memory_space<vmem>>, vector<1x4xf32>
    %c0_153 = arith.constant 0 : index
    %c484 = arith.constant 484 : index
    %290 = vector.load %arg1[%c0_153, %c484] : memref<1x512xf32, #tpu.memory_space<vmem>>, vector<1x4xf32>
    %291 = arith.addf %289, %290 : vector<1x4xf32>
    %c0_154 = arith.constant 0 : index
    %c488 = arith.constant 488 : index
    %292 = vector.load %arg1[%c0_154, %c488] : memref<1x512xf32, #tpu.memory_space<vmem>>, vector<1x4xf32>
    %293 = arith.addf %291, %292 : vector<1x4xf32>
    %c0_155 = arith.constant 0 : index
    %c492 = arith.constant 492 : index
    %294 = vector.load %arg1[%c0_155, %c492] : memref<1x512xf32, #tpu.memory_space<vmem>>, vector<1x4xf32>
    %295 = arith.addf %293, %294 : vector<1x4xf32>
    %c0_156 = arith.constant 0 : index
    %c496 = arith.constant 496 : index
    %296 = vector.load %arg1[%c0_156, %c496] : memref<1x512xf32, #tpu.memory_space<vmem>>, vector<1x4xf32>
    %297 = arith.addf %295, %296 : vector<1x4xf32>
    %c0_157 = arith.constant 0 : index
    %c500 = arith.constant 500 : index
    %298 = vector.load %arg1[%c0_157, %c500] : memref<1x512xf32, #tpu.memory_space<vmem>>, vector<1x4xf32>
    %299 = arith.addf %297, %298 : vector<1x4xf32>
    %c0_158 = arith.constant 0 : index
    %c504 = arith.constant 504 : index
    %300 = vector.load %arg1[%c0_158, %c504] : memref<1x512xf32, #tpu.memory_space<vmem>>, vector<1x4xf32>
    %301 = arith.addf %299, %300 : vector<1x4xf32>
    %c0_159 = arith.constant 0 : index
    %c508 = arith.constant 508 : index
    %302 = vector.load %arg1[%c0_159, %c508] : memref<1x512xf32, #tpu.memory_space<vmem>>, vector<1x4xf32>
    %303 = arith.addf %301, %302 : vector<1x4xf32>
    %304 = vector.extract_strided_slice %3 {offsets = [0, 15], sizes = [1, 1], strides = [1, 1]} : vector<1x16xf32> to vector<1x1xf32>
    %305 = vector.broadcast %304 : vector<1x1xf32> to vector<1x4xf32>
    %306 = arith.divf %303, %305 : vector<1x4xf32>
    %c0_160 = arith.constant 0 : index
    %c60_161 = arith.constant 60 : index
    %307 = vector.load %arg3[%c0_160, %c60_161] : memref<1x64xf32, #tpu.memory_space<vmem>>, vector<1x4xf32>
    tpu.vector_store %arg3[%c0_160, %c60_161], %306 {strides = array<i32>} : memref<1x64xf32, #tpu.memory_space<vmem>>, vector<1x4xf32>,
    return
  }
  func.func @transform_0(%arg0: i32) -> (i32, i32) {
    %c0_i32 = arith.constant 0 : i32
    %c0_i32_0 = arith.constant 0 : i32
    return %arg0, %c0_i32 : i32, i32
  }
  func.func @transform_1(%arg0: i32) -> (i32, i32) {
    %c0_i32 = arith.constant 0 : i32
    %c0_i32_0 = arith.constant 0 : i32
    return %arg0, %c0_i32 : i32, i32
  }
  func.func @transform_2(%arg0: i32) -> (i32, i32) {
    %c0_i32 = arith.constant 0 : i32
    %c0_i32_0 = arith.constant 0 : i32
    return %arg0, %c0_i32 : i32, i32
  }
}

</mosaic_0001>

<llo_original>
// kernel: tpu_custom_call.1
$region0: #{tpu_custom_call.1}
  #allocation0 [shape = 'u32[]', space=smem, size = 0x4, offset = 0x4, fixed_abs, tag = 'smem constant byte address 0x4 - core index']
  #allocation1 [shape = 'u32[144,128]{1,0:T(1,128)}', space=vmem, size = 0x12000, scoped, tag = 'internal scratch']
  %s0 = inlined_call_operand.hbm [shape: f32[1,512], index: 0, kind: input, shape index: {}]
  %s1 = inlined_call_operand.vmem [shape: s32[1,16], index: 1, kind: input, shape index: {}]
  %s2 = inlined_call_operand.hbm [shape: f32[1,64], index: 2, kind: output, shape index: {}]
  %s3 = sld [smem:[#allocation0]]
  $region22: #{tpu_custom_call.1} parent=0
    _
  %s5 = ssub.s32 1, %s3
  %s6 = scalar_select 0, %s5, %s3
  $region1: #{tpu_custom_call.1} parent=0
    #allocation2 [shape = 'u8[2048]{0}', space=vmem, size = 0x800, scoped, tag = 'input window, operand 0, single buffered']
    #allocation3 [shape = 's32[1]{0}', space=sflag, size = 0x4, scoped, tag = 'scoped memory for tpu_custom_call.1']
    #allocation4 [shape = 's32[1]{0}', space=sflag, size = 0x4, scoped, tag = 'scoped memory for tpu_custom_call.1']
    #allocation5 [shape = 'u8[512]{0}', space=vmem, size = 0x400, scoped, tag = 'output window, operand 0, single buffered']
    %7 = vsyncpa [#allocation3], 0
    %8 = vsyncpa [#allocation4], 0
    // Predicated region
    $region2: #{tpu_custom_call.1} parent=1 // pred_check
      _
    $region3: #{tpu_custom_call.1} parent=1 // pred_check_branch
      %10 = sbr.rel (0) target = $region5
    $region4: #{tpu_custom_call.1} parent=1 // pred_region
      %s12 = ssub.s32 64, 64
      %13 = vsyncadd [#allocation3], %s12
      %s15 = sshll.u32 [#allocation2], 4
      %s16 = int_to_ptr.vmem [resolvable:$true] %s15
      %18 = dma.hbm_to_vmem [thread:$0]  %s0, 64, %s16, [#allocation3]
    $region5: #{tpu_custom_call.1} parent=1 // pred_fallthru
      _
    // Predicated region
    $region6: #{tpu_custom_call.1} parent=1 // pred_check
      _
    $region7: #{tpu_custom_call.1} parent=1 // pred_check_branch
      %20 = sbr.rel (0) target = $region9
    $region8: #{tpu_custom_call.1} parent=1 // pred_region
      _
    $region9: #{tpu_custom_call.1} parent=1 // pred_fallthru
      _
    // Predicated region
    $region10: #{tpu_custom_call.1} parent=1 // pred_check
      _
    $region11: #{tpu_custom_call.1} parent=1 // pred_check_branch
      %22 = sbr.rel (0) target = $region13
    $region12: #{tpu_custom_call.1} parent=1 // pred_region
      %23 = dma.done [#allocation3], 64
    $region13: #{tpu_custom_call.1} parent=1 // pred_fallthru
      _
    %v24 = vld [vmem:[%s1] sm:$0x1]
    %v25 = vcvt.s32.f32 %v24
    %v26 = vmax.f32 %v25, 1.0
    %v27 = vld [vmem:[#allocation2] sm:$0x1]
    %29 = vrot.lane.b32.xlu0 %v27, 124
    %v30 = vpop.permute.xlu0 %29
    %v32 = vadd.f32 %v27, %v30
    %33 = vrot.lane.b32.xlu0 %v27, 120
    %v34 = vpop.permute.xlu0 %33
    %v36 = vadd.f32 %v32, %v34
    %37 = vrot.lane.b32.xlu0 %v27, 116
    %v38 = vpop.permute.xlu0 %37
    %v40 = vadd.f32 %v36, %v38
    %41 = vrot.lane.b32.xlu0 %v27, 112
    %v42 = vpop.permute.xlu0 %41
    %v44 = vadd.f32 %v40, %v42
    %45 = vrot.lane.b32.xlu0 %v27, 108
    %v46 = vpop.permute.xlu0 %45
    %v48 = vadd.f32 %v44, %v46
    %49 = vrot.lane.b32.xlu0 %v27, 104
    %v50 = vpop.permute.xlu0 %49
    %v52 = vadd.f32 %v48, %v50
    %53 = vrot.lane.b32.xlu0 %v27, 100
    %v54 = vpop.permute.xlu0 %53
    %v56 = vadd.f32 %v52, %v54
    %58 = vset.pattern.permute.xlu0 0
    %59 = vperm.xlu0 %58, %v26
    %v60 = vpop.permute.xlu0 %59
    %v62 = vlaneseq
    %v63 = vshrl.u32 %v62, 7
    %v64 = vsub.s32 0, %v63
    %v65 = vrot.slane %v60, %v64
    %v66 = vrcp.pop %v65
    %v67 = vmul.f32 %v56, %v66
    %vm68 = vcmask 24576
    %69 = vst.msk [vmem:[#allocation5] sm:$0x1] %vm68, %v67
    %v70 = vld [vmem:[#allocation2] sm:$0x1]
    %72 = vrot.lane.b32.xlu0 %v70, 124
    %v73 = vpop.permute.xlu0 %72
    %v75 = vadd.f32 %v70, %v73
    %76 = vrot.lane.b32.xlu0 %v70, 120
    %v77 = vpop.permute.xlu0 %76
    %v79 = vadd.f32 %v75, %v77
    %80 = vrot.lane.b32.xlu0 %v70, 116
    %v81 = vpop.permute.xlu0 %80
    %v83 = vadd.f32 %v79, %v81
    %84 = vrot.lane.b32.xlu0 %v70, 112
    %v85 = vpop.permute.xlu0 %84
    %v87 = vadd.f32 %v83, %v85
    %88 = vrot.lane.b32.xlu0 %v70, 108
    %v89 = vpop.permute.xlu0 %88
    %v91 = vadd.f32 %v87, %v89
    %92 = vrot.lane.b32.xlu0 %v70, 104
    %v93 = vpop.permute.xlu0 %92
    %v95 = vadd.f32 %v91, %v93
    %96 = vrot.lane.b32.xlu0 %v70, 100
    %v97 = vpop.permute.xlu0 %96
    %v99 = vadd.f32 %v95, %v97
    %100 = vset.pattern.permute.xlu0 1
    %101 = vperm.xlu0 %100, %v26
    %v102 = vpop.permute.xlu0 %101
    %v104 = vlaneseq
    %v105 = vshrl.u32 %v104, 7
    %v106 = vsub.s32 0, %v105
    %v107 = vrot.slane %v102, %v106
    %v108 = vrcp.pop %v107
    %v109 = vmul.f32 %v99, %v108
    %v111 = vlaneseq
    %v112 = vshrl.u32 %v111, 7
    %v113 = vsub.s32 0, %v112
    %v114 = vrot.slane %v109, %v113
    %115 = vrot.lane.b32.xlu0 %v114, 100
    %v116 = vpop.permute.xlu0 %115
    %vm118 = vcmask 57376
    %119 = vst.msk [vmem:[#allocation5] sm:$0x1] %vm118, %v116
    %v120 = vld [vmem:[#allocation2] sm:$0x1]
    %122 = vrot.lane.b32.xlu0 %v120, 124
    %v123 = vpop.permute.xlu0 %122
    %v125 = vadd.f32 %v120, %v123
    %126 = vrot.lane.b32.xlu0 %v120, 120
    %v127 = vpop.permute.xlu0 %126
    %v129 = vadd.f32 %v125, %v127
    %130 = vrot.lane.b32.xlu0 %v120, 116
    %v131 = vpop.permute.xlu0 %130
    %v133 = vadd.f32 %v129, %v131
    %134 = vrot.lane.b32.xlu0 %v120, 112
    %v135 = vpop.permute.xlu0 %134
    %v137 = vadd.f32 %v133, %v135
    %138 = vrot.lane.b32.xlu0 %v120, 108
    %v139 = vpop.permute.xlu0 %138
    %v141 = vadd.f32 %v137, %v139
    %142 = vrot.lane.b32.xlu0 %v120, 104
    %v143 = vpop.permute.xlu0 %142
    %v145 = vadd.f32 %v141, %v143
    %146 = vrot.lane.b32.xlu0 %v120, 100
    %v147 = vpop.permute.xlu0 %146
    %v149 = vadd.f32 %v145, %v147
    %150 = vset.pattern.permute.xlu0 2
    %151 = vperm.xlu0 %150, %v26
    %v152 = vpop.permute.xlu0 %151
    %v154 = vlaneseq
    %v155 = vshrl.u32 %v154, 7
    %v156 = vsub.s32 0, %v155
    %v157 = vrot.slane %v152, %v156
    %v158 = vrcp.pop %v157
    %v159 = vmul.f32 %v149, %v158
    %v161 = vlaneseq
    %v162 = vshrl.u32 %v161, 7
    %v163 = vsub.s32 0, %v162
    %v164 = vrot.slane %v159, %v163
    %165 = vrot.lane.b32.xlu0 %v164, 72
    %v166 = vpop.permute.xlu0 %165
    %vm168 = vcmask 90176
    %169 = vst.msk [vmem:[#allocation5] sm:$0x1] %vm168, %v166
    %v170 = vld [vmem:[#allocation2] sm:$0x1]
    %172 = vrot.lane.b32.xlu0 %v170, 124
    %v173 = vpop.permute.xlu0 %172
    %v175 = vadd.f32 %v170, %v173
    %176 = vrot.lane.b32.xlu0 %v170, 120
    %v177 = vpop.permute.xlu0 %176
    %v179 = vadd.f32 %v175, %v177
    %180 = vrot.lane.b32.xlu0 %v170, 116
    %v181 = vpop.permute.xlu0 %180
    %v183 = vadd.f32 %v179, %v181
    %184 = vrot.lane.b32.xlu0 %v170, 112
    %v185 = vpop.permute.xlu0 %184
    %v187 = vadd.f32 %v183, %v185
    %188 = vrot.lane.b32.xlu0 %v170, 108
    %v189 = vpop.permute.xlu0 %188
    %v191 = vadd.f32 %v187, %v189
    %192 = vrot.lane.b32.xlu0 %v170, 104
    %v193 = vpop.permute.xlu0 %192
    %v195 = vadd.f32 %v191, %v193
    %196 = vrot.lane.b32.xlu0 %v170, 100
    %v197 = vpop.permute.xlu0 %196
    %v199 = vadd.f32 %v195, %v197
    %200 = vset.pattern.permute.xlu0 3
    %201 = vperm.xlu0 %200, %v26
    %v202 = vpop.permute.xlu0 %201
    %v204 = vlaneseq
    %v205 = vshrl.u32 %v204, 7
    %v206 = vsub.s32 0, %v205
    %v207 = vrot.slane %v202, %v206
    %v208 = vrcp.pop %v207
    %v209 = vmul.f32 %v199, %v208
    %v211 = vlaneseq
    %v212 = vshrl.u32 %v211, 7
    %v213 = vsub.s32 0, %v212
    %v214 = vrot.slane %v209, %v213
    %215 = vrot.lane.b32.xlu0 %v214, 44
    %v216 = vpop.permute.xlu0 %215
    %vm218 = vcmask 122976
    %219 = vst.msk [vmem:[#allocation5] sm:$0x1] %vm218, %v216
    %v220 = vld [vmem:[#allocation2 + $0x1] sm:$0x1]
    %222 = vrot.lane.b32.xlu0 %v220, 124
    %v223 = vpop.permute.xlu0 %222
    %v225 = vadd.f32 %v220, %v223
    %226 = vrot.lane.b32.xlu0 %v220, 120
    %v227 = vpop.permute.xlu0 %226
    %v229 = vadd.f32 %v225, %v227
    %230 = vrot.lane.b32.xlu0 %v220, 116
    %v231 = vpop.permute.xlu0 %230
    %v233 = vadd.f32 %v229, %v231
    %234 = vrot.lane.b32.xlu0 %v220, 112
    %v235 = vpop.permute.xlu0 %234
    %v237 = vadd.f32 %v233, %v235
    %238 = vrot.lane.b32.xlu0 %v220, 108
    %v239 = vpop.permute.xlu0 %238
    %v241 = vadd.f32 %v237, %v239
    %242 = vrot.lane.b32.xlu0 %v220, 104
    %v243 = vpop.permute.xlu0 %242
    %v245 = vadd.f32 %v241, %v243
    %246 = vrot.lane.b32.xlu0 %v220, 100
    %v247 = vpop.permute.xlu0 %246
    %v249 = vadd.f32 %v245, %v247
    %250 = vset.pattern.permute.xlu0 4
    %251 = vperm.xlu0 %250, %v26
    %v252 = vpop.permute.xlu0 %251
    %v254 = vlaneseq
    %v255 = vshrl.u32 %v254, 7
    %v256 = vsub.s32 0, %v255
    %v257 = vrot.slane %v252, %v256
    %v258 = vrcp.pop %v257
    %v259 = vmul.f32 %v249, %v258
    %v261 = vlaneseq
    %v262 = vshrl.u32 %v261, 7
    %v263 = vsub.s32 0, %v262
    %v264 = vrot.slane %v259, %v263
    %265 = vrot.lane.b32.xlu0 %v264, 16
    %v266 = vpop.permute.xlu0 %265
    %vm268 = vcmask 155776
    %269 = vst.msk [vmem:[#allocation5] sm:$0x1] %vm268, %v266
    %v270 = vld [vmem:[#allocation2 + $0x1] sm:$0x1]
    %272 = vrot.lane.b32.xlu0 %v270, 124
    %v273 = vpop.permute.xlu0 %272
    %v275 = vadd.f32 %v270, %v273
    %276 = vrot.lane.b32.xlu0 %v270, 120
    %v277 = vpop.permute.xlu0 %276
    %v279 = vadd.f32 %v275, %v277
    %280 = vrot.lane.b32.xlu0 %v270, 116
    %v281 = vpop.permute.xlu0 %280
    %v283 = vadd.f32 %v279, %v281
    %284 = vrot.lane.b32.xlu0 %v270, 112
    %v285 = vpop.permute.xlu0 %284
    %v287 = vadd.f32 %v283, %v285
    %288 = vrot.lane.b32.xlu0 %v270, 108
    %v289 = vpop.permute.xlu0 %288
    %v291 = vadd.f32 %v287, %v289
    %292 = vrot.lane.b32.xlu0 %v270, 104
    %v293 = vpop.permute.xlu0 %292
    %v295 = vadd.f32 %v291, %v293
    %296 = vrot.lane.b32.xlu0 %v270, 100
    %v297 = vpop.permute.xlu0 %296
    %v299 = vadd.f32 %v295, %v297
    %300 = vset.pattern.permute.xlu0 5
    %301 = vperm.xlu0 %300, %v26
    %v302 = vpop.permute.xlu0 %301
    %v304 = vlaneseq
    %v305 = vshrl.u32 %v304, 7
    %v306 = vsub.s32 0, %v305
    %v307 = vrot.slane %v302, %v306
    %v308 = vrcp.pop %v307
    %v309 = vmul.f32 %v299, %v308
    %v311 = vlaneseq
    %v312 = vshrl.u32 %v311, 7
    %v313 = vsub.s32 0, %v312
    %v314 = vrot.slane %v309, %v313
    %315 = vrot.lane.b32.xlu0 %v314, 116
    %v316 = vpop.permute.xlu0 %315
    %vm318 = vcmask 188576
    %319 = vst.msk [vmem:[#allocation5] sm:$0x1] %vm318, %v316
    %v320 = vld [vmem:[#allocation2 + $0x1] sm:$0x1]
    %322 = vrot.lane.b32.xlu0 %v320, 124
    %v323 = vpop.permute.xlu0 %322
    %v325 = vadd.f32 %v320, %v323
    %326 = vrot.lane.b32.xlu0 %v320, 120
    %v327 = vpop.permute.xlu0 %326
    %v329 = vadd.f32 %v325, %v327
    %330 = vrot.lane.b32.xlu0 %v320, 116
    %v331 = vpop.permute.xlu0 %330
    %v333 = vadd.f32 %v329, %v331
    %334 = vrot.lane.b32.xlu0 %v320, 112
    %v335 = vpop.permute.xlu0 %334
    %v337 = vadd.f32 %v333, %v335
    %338 = vrot.lane.b32.xlu0 %v320, 108
    %v339 = vpop.permute.xlu0 %338
    %v341 = vadd.f32 %v337, %v339
    %342 = vrot.lane.b32.xlu0 %v320, 104
    %v343 = vpop.permute.xlu0 %342
    %v345 = vadd.f32 %v341, %v343
    %346 = vrot.lane.b32.xlu0 %v320, 100
    %v347 = vpop.permute.xlu0 %346
    %v349 = vadd.f32 %v345, %v347
    %350 = vset.pattern.permute.xlu0 6
    %351 = vperm.xlu0 %350, %v26
    %v352 = vpop.permute.xlu0 %351
    %v354 = vlaneseq
    %v355 = vshrl.u32 %v354, 7
    %v356 = vsub.s32 0, %v355
    %v357 = vrot.slane %v352, %v356
    %v358 = vrcp.pop %v357
    %v359 = vmul.f32 %v349, %v358
    %v361 = vlaneseq
    %v362 = vshrl.u32 %v361, 7
    %v363 = vsub.s32 0, %v362
    %v364 = vrot.slane %v359, %v363
    %365 = vrot.lane.b32.xlu0 %v364, 88
    %v366 = vpop.permute.xlu0 %365
    %vm368 = vcmask 221376
    %369 = vst.msk [vmem:[#allocation5] sm:$0x1] %vm368, %v366
    %v370 = vld [vmem:[#allocation2 + $0x1] sm:$0x1]
    %372 = vrot.lane.b32.xlu0 %v370, 124
    %v373 = vpop.permute.xlu0 %372
    %v375 = vadd.f32 %v370, %v373
    %376 = vrot.lane.b32.xlu0 %v370, 120
    %v377 = vpop.permute.xlu0 %376
    %v379 = vadd.f32 %v375, %v377
    %380 = vrot.lane.b32.xlu0 %v370, 116
    %v381 = vpop.permute.xlu0 %380
    %v383 = vadd.f32 %v379, %v381
    %384 = vrot.lane.b32.xlu0 %v370, 112
    %v385 = vpop.permute.xlu0 %384
    %v387 = vadd.f32 %v383, %v385
    %388 = vrot.lane.b32.xlu0 %v370, 108
    %v389 = vpop.permute.xlu0 %388
    %v391 = vadd.f32 %v387, %v389
    %392 = vrot.lane.b32.xlu0 %v370, 104
    %v393 = vpop.permute.xlu0 %392
    %v395 = vadd.f32 %v391, %v393
    %396 = vrot.lane.b32.xlu0 %v370, 100
    %v397 = vpop.permute.xlu0 %396
    %v399 = vadd.f32 %v395, %v397
    %400 = vset.pattern.permute.xlu0 7
    %401 = vperm.xlu0 %400, %v26
    %v402 = vpop.permute.xlu0 %401
    %v404 = vlaneseq
    %v405 = vshrl.u32 %v404, 7
    %v406 = vsub.s32 0, %v405
    %v407 = vrot.slane %v402, %v406
    %v408 = vrcp.pop %v407
    %v409 = vmul.f32 %v399, %v408
    %v411 = vlaneseq
    %v412 = vshrl.u32 %v411, 7
    %v413 = vsub.s32 0, %v412
    %v414 = vrot.slane %v409, %v413
    %415 = vrot.lane.b32.xlu0 %v414, 60
    %v416 = vpop.permute.xlu0 %415
    %vm418 = vcmask 254176
    %419 = vst.msk [vmem:[#allocation5] sm:$0x1] %vm418, %v416
    %v420 = vld [vmem:[#allocation2 + $0x2] sm:$0x1]
    %422 = vrot.lane.b32.xlu0 %v420, 124
    %v423 = vpop.permute.xlu0 %422
    %v425 = vadd.f32 %v420, %v423
    %426 = vrot.lane.b32.xlu0 %v420, 120
    %v427 = vpop.permute.xlu0 %426
    %v429 = vadd.f32 %v425, %v427
    %430 = vrot.lane.b32.xlu0 %v420, 116
    %v431 = vpop.permute.xlu0 %430
    %v433 = vadd.f32 %v429, %v431
    %434 = vrot.lane.b32.xlu0 %v420, 112
    %v435 = vpop.permute.xlu0 %434
    %v437 = vadd.f32 %v433, %v435
    %438 = vrot.lane.b32.xlu0 %v420, 108
    %v439 = vpop.permute.xlu0 %438
    %v441 = vadd.f32 %v437, %v439
    %442 = vrot.lane.b32.xlu0 %v420, 104
    %v443 = vpop.permute.xlu0 %442
    %v445 = vadd.f32 %v441, %v443
    %446 = vrot.lane.b32.xlu0 %v420, 100
    %v447 = vpop.permute.xlu0 %446
    %v449 = vadd.f32 %v445, %v447
    %450 = vset.pattern.permute.xlu0 8
    %451 = vperm.xlu0 %450, %v26
    %v452 = vpop.permute.xlu0 %451
    %v454 = vlaneseq
    %v455 = vshrl.u32 %v454, 7
    %v456 = vsub.s32 0, %v455
    %v457 = vrot.slane %v452, %v456
    %v458 = vrcp.pop %v457
    %v459 = vmul.f32 %v449, %v458
    %v461 = vlaneseq
    %v462 = vshrl.u32 %v461, 7
    %v463 = vsub.s32 0, %v462
    %v464 = vrot.slane %v459, %v463
    %465 = vrot.lane.b32.xlu0 %v464, 32
    %v466 = vpop.permute.xlu0 %465
    %vm468 = vcmask 286976
    %469 = vst.msk [vmem:[#allocation5] sm:$0x1] %vm468, %v466
    %v470 = vld [vmem:[#allocation2 + $0x2] sm:$0x1]
    %472 = vrot.lane.b32.xlu0 %v470, 124
    %v473 = vpop.permute.xlu0 %472
    %v475 = vadd.f32 %v470, %v473
    %476 = vrot.lane.b32.xlu0 %v470, 120
    %v477 = vpop.permute.xlu0 %476
    %v479 = vadd.f32 %v475, %v477
    %480 = vrot.lane.b32.xlu0 %v470, 116
    %v481 = vpop.permute.xlu0 %480
    %v483 = vadd.f32 %v479, %v481
    %484 = vrot.lane.b32.xlu0 %v470, 112
    %v485 = vpop.permute.xlu0 %484
    %v487 = vadd.f32 %v483, %v485
    %488 = vrot.lane.b32.xlu0 %v470, 108
    %v489 = vpop.permute.xlu0 %488
    %v491 = vadd.f32 %v487, %v489
    %492 = vrot.lane.b32.xlu0 %v470, 104
    %v493 = vpop.permute.xlu0 %492
    %v495 = vadd.f32 %v491, %v493
    %496 = vrot.lane.b32.xlu0 %v470, 100
    %v497 = vpop.permute.xlu0 %496
    %v499 = vadd.f32 %v495, %v497
    %500 = vset.pattern.permute.xlu0 9
    %501 = vperm.xlu0 %500, %v26
    %v502 = vpop.permute.xlu0 %501
    %v504 = vlaneseq
    %v505 = vshrl.u32 %v504, 7
    %v506 = vsub.s32 0, %v505
    %v507 = vrot.slane %v502, %v506
    %v508 = vrcp.pop %v507
    %v509 = vmul.f32 %v499, %v508
    %v511 = vlaneseq
    %v512 = vshrl.u32 %v511, 7
    %v513 = vsub.s32 0, %v512
    %v514 = vrot.slane %v509, %v513
    %515 = vrot.lane.b32.xlu0 %v514, 4
    %v516 = vpop.permute.xlu0 %515
    %vm518 = vcmask 319776
    %519 = vst.msk [vmem:[#allocation5] sm:$0x1] %vm518, %v516
    %v520 = vld [vmem:[#allocation2 + $0x2] sm:$0x1]
    %522 = vrot.lane.b32.xlu0 %v520, 124
    %v523 = vpop.permute.xlu0 %522
    %v525 = vadd.f32 %v520, %v523
    %526 = vrot.lane.b32.xlu0 %v520, 120
    %v527 = vpop.permute.xlu0 %526
    %v529 = vadd.f32 %v525, %v527
    %530 = vrot.lane.b32.xlu0 %v520, 116
    %v531 = vpop.permute.xlu0 %530
    %v533 = vadd.f32 %v529, %v531
    %534 = vrot.lane.b32.xlu0 %v520, 112
    %v535 = vpop.permute.xlu0 %534
    %v537 = vadd.f32 %v533, %v535
    %538 = vrot.lane.b32.xlu0 %v520, 108
    %v539 = vpop.permute.xlu0 %538
    %v541 = vadd.f32 %v537, %v539
    %542 = vrot.lane.b32.xlu0 %v520, 104
    %v543 = vpop.permute.xlu0 %542
    %v545 = vadd.f32 %v541, %v543
    %546 = vrot.lane.b32.xlu0 %v520, 100
    %v547 = vpop.permute.xlu0 %546
    %v549 = vadd.f32 %v545, %v547
    %550 = vset.pattern.permute.xlu0 10
    %551 = vperm.xlu0 %550, %v26
    %v552 = vpop.permute.xlu0 %551
    %v554 = vlaneseq
    %v555 = vshrl.u32 %v554, 7
    %v556 = vsub.s32 0, %v555
    %v557 = vrot.slane %v552, %v556
    %v558 = vrcp.pop %v557
    %v559 = vmul.f32 %v549, %v558
    %v561 = vlaneseq
    %v562 = vshrl.u32 %v561, 7
    %v563 = vsub.s32 0, %v562
    %v564 = vrot.slane %v559, %v563
    %565 = vrot.lane.b32.xlu0 %v564, 104
    %v566 = vpop.permute.xlu0 %565
    %vm568 = vcmask 352576
    %569 = vst.msk [vmem:[#allocation5] sm:$0x1] %vm568, %v566
    %v570 = vld [vmem:[#allocation2 + $0x2] sm:$0x1]
    %572 = vrot.lane.b32.xlu0 %v570, 124
    %v573 = vpop.permute.xlu0 %572
    %v575 = vadd.f32 %v570, %v573
    %576 = vrot.lane.b32.xlu0 %v570, 120
    %v577 = vpop.permute.xlu0 %576
    %v579 = vadd.f32 %v575, %v577
    %580 = vrot.lane.b32.xlu0 %v570, 116
    %v581 = vpop.permute.xlu0 %580
    %v583 = vadd.f32 %v579, %v581
    %584 = vrot.lane.b32.xlu0 %v570, 112
    %v585 = vpop.permute.xlu0 %584
    %v587 = vadd.f32 %v583, %v585
    %588 = vrot.lane.b32.xlu0 %v570, 108
    %v589 = vpop.permute.xlu0 %588
    %v591 = vadd.f32 %v587, %v589
    %592 = vrot.lane.b32.xlu0 %v570, 104
    %v593 = vpop.permute.xlu0 %592
    %v595 = vadd.f32 %v591, %v593
    %596 = vrot.lane.b32.xlu0 %v570, 100
    %v597 = vpop.permute.xlu0 %596
    %v599 = vadd.f32 %v595, %v597
    %600 = vset.pattern.permute.xlu0 11
    %601 = vperm.xlu0 %600, %v26
    %v602 = vpop.permute.xlu0 %601
    %v604 = vlaneseq
    %v605 = vshrl.u32 %v604, 7
    %v606 = vsub.s32 0, %v605
    %v607 = vrot.slane %v602, %v606
    %v608 = vrcp.pop %v607
    %v609 = vmul.f32 %v599, %v608
    %v611 = vlaneseq
    %v612 = vshrl.u32 %v611, 7
    %v613 = vsub.s32 0, %v612
    %v614 = vrot.slane %v609, %v613
    %615 = vrot.lane.b32.xlu0 %v614, 76
    %v616 = vpop.permute.xlu0 %615
    %vm618 = vcmask 385376
    %619 = vst.msk [vmem:[#allocation5] sm:$0x1] %vm618, %v616
    %v620 = vld [vmem:[#allocation2 + $0x3] sm:$0x1]
    %622 = vrot.lane.b32.xlu0 %v620, 124
    %v623 = vpop.permute.xlu0 %622
    %v625 = vadd.f32 %v620, %v623
    %626 = vrot.lane.b32.xlu0 %v620, 120
    %v627 = vpop.permute.xlu0 %626
    %v629 = vadd.f32 %v625, %v627
    %630 = vrot.lane.b32.xlu0 %v620, 116
    %v631 = vpop.permute.xlu0 %630
    %v633 = vadd.f32 %v629, %v631
    %634 = vrot.lane.b32.xlu0 %v620, 112
    %v635 = vpop.permute.xlu0 %634
    %v637 = vadd.f32 %v633, %v635
    %638 = vrot.lane.b32.xlu0 %v620, 108
    %v639 = vpop.permute.xlu0 %638
    %v641 = vadd.f32 %v637, %v639
    %642 = vrot.lane.b32.xlu0 %v620, 104
    %v643 = vpop.permute.xlu0 %642
    %v645 = vadd.f32 %v641, %v643
    %646 = vrot.lane.b32.xlu0 %v620, 100
    %v647 = vpop.permute.xlu0 %646
    %v649 = vadd.f32 %v645, %v647
    %650 = vset.pattern.permute.xlu0 12
    %651 = vperm.xlu0 %650, %v26
    %v652 = vpop.permute.xlu0 %651
    %v654 = vlaneseq
    %v655 = vshrl.u32 %v654, 7
    %v656 = vsub.s32 0, %v655
    %v657 = vrot.slane %v652, %v656
    %v658 = vrcp.pop %v657
    %v659 = vmul.f32 %v649, %v658
    %v661 = vlaneseq
    %v662 = vshrl.u32 %v661, 7
    %v663 = vsub.s32 0, %v662
    %v664 = vrot.slane %v659, %v663
    %665 = vrot.lane.b32.xlu0 %v664, 48
    %v666 = vpop.permute.xlu0 %665
    %vm668 = vcmask 418176
    %669 = vst.msk [vmem:[#allocation5] sm:$0x1] %vm668, %v666
    %v670 = vld [vmem:[#allocation2 + $0x3] sm:$0x1]
    %672 = vrot.lane.b32.xlu0 %v670, 124
    %v673 = vpop.permute.xlu0 %672
    %v675 = vadd.f32 %v670, %v673
    %676 = vrot.lane.b32.xlu0 %v670, 120
    %v677 = vpop.permute.xlu0 %676
    %v679 = vadd.f32 %v675, %v677
    %680 = vrot.lane.b32.xlu0 %v670, 116
    %v681 = vpop.permute.xlu0 %680
    %v683 = vadd.f32 %v679, %v681
    %684 = vrot.lane.b32.xlu0 %v670, 112
    %v685 = vpop.permute.xlu0 %684
    %v687 = vadd.f32 %v683, %v685
    %688 = vrot.lane.b32.xlu0 %v670, 108
    %v689 = vpop.permute.xlu0 %688
    %v691 = vadd.f32 %v687, %v689
    %692 = vrot.lane.b32.xlu0 %v670, 104
    %v693 = vpop.permute.xlu0 %692
    %v695 = vadd.f32 %v691, %v693
    %696 = vrot.lane.b32.xlu0 %v670, 100
    %v697 = vpop.permute.xlu0 %696
    %v699 = vadd.f32 %v695, %v697
    %700 = vset.pattern.permute.xlu0 13
    %701 = vperm.xlu0 %700, %v26
    %v702 = vpop.permute.xlu0 %701
    %v704 = vlaneseq
    %v705 = vshrl.u32 %v704, 7
    %v706 = vsub.s32 0, %v705
    %v707 = vrot.slane %v702, %v706
    %v708 = vrcp.pop %v707
    %v709 = vmul.f32 %v699, %v708
    %v711 = vlaneseq
    %v712 = vshrl.u32 %v711, 7
    %v713 = vsub.s32 0, %v712
    %v714 = vrot.slane %v709, %v713
    %715 = vrot.lane.b32.xlu0 %v714, 20
    %v716 = vpop.permute.xlu0 %715
    %vm718 = vcmask 450976
    %719 = vst.msk [vmem:[#allocation5] sm:$0x1] %vm718, %v716
    %v720 = vld [vmem:[#allocation2 + $0x3] sm:$0x1]
    %722 = vrot.lane.b32.xlu0 %v720, 124
    %v723 = vpop.permute.xlu0 %722
    %v725 = vadd.f32 %v720, %v723
    %726 = vrot.lane.b32.xlu0 %v720, 120
    %v727 = vpop.permute.xlu0 %726
    %v729 = vadd.f32 %v725, %v727
    %730 = vrot.lane.b32.xlu0 %v720, 116
    %v731 = vpop.permute.xlu0 %730
    %v733 = vadd.f32 %v729, %v731
    %734 = vrot.lane.b32.xlu0 %v720, 112
    %v735 = vpop.permute.xlu0 %734
    %v737 = vadd.f32 %v733, %v735
    %738 = vrot.lane.b32.xlu0 %v720, 108
    %v739 = vpop.permute.xlu0 %738
    %v741 = vadd.f32 %v737, %v739
    %742 = vrot.lane.b32.xlu0 %v720, 104
    %v743 = vpop.permute.xlu0 %742
    %v745 = vadd.f32 %v741, %v743
    %746 = vrot.lane.b32.xlu0 %v720, 100
    %v747 = vpop.permute.xlu0 %746
    %v749 = vadd.f32 %v745, %v747
    %750 = vset.pattern.permute.xlu0 14
    %751 = vperm.xlu0 %750, %v26
    %v752 = vpop.permute.xlu0 %751
    %v754 = vlaneseq
    %v755 = vshrl.u32 %v754, 7
    %v756 = vsub.s32 0, %v755
    %v757 = vrot.slane %v752, %v756
    %v758 = vrcp.pop %v757
    %v759 = vmul.f32 %v749, %v758
    %v761 = vlaneseq
    %v762 = vshrl.u32 %v761, 7
    %v763 = vsub.s32 0, %v762
    %v764 = vrot.slane %v759, %v763
    %765 = vrot.lane.b32.xlu0 %v764, 120
    %v766 = vpop.permute.xlu0 %765
    %vm768 = vcmask 483776
    %769 = vst.msk [vmem:[#allocation5] sm:$0x1] %vm768, %v766
    %v770 = vld [vmem:[#allocation2 + $0x3] sm:$0x1]
    %772 = vrot.lane.b32.xlu0 %v770, 124
    %v773 = vpop.permute.xlu0 %772
    %v775 = vadd.f32 %v770, %v773
    %776 = vrot.lane.b32.xlu0 %v770, 120
    %v777 = vpop.permute.xlu0 %776
    %v779 = vadd.f32 %v775, %v777
    %780 = vrot.lane.b32.xlu0 %v770, 116
    %v781 = vpop.permute.xlu0 %780
    %v783 = vadd.f32 %v779, %v781
    %784 = vrot.lane.b32.xlu0 %v770, 112
    %v785 = vpop.permute.xlu0 %784
    %v787 = vadd.f32 %v783, %v785
    %788 = vrot.lane.b32.xlu0 %v770, 108
    %v789 = vpop.permute.xlu0 %788
    %v791 = vadd.f32 %v787, %v789
    %792 = vrot.lane.b32.xlu0 %v770, 104
    %v793 = vpop.permute.xlu0 %792
    %v795 = vadd.f32 %v791, %v793
    %796 = vrot.lane.b32.xlu0 %v770, 100
    %v797 = vpop.permute.xlu0 %796
    %v799 = vadd.f32 %v795, %v797
    %800 = vset.pattern.permute.xlu0 15
    %801 = vperm.xlu0 %800, %v26
    %v802 = vpop.permute.xlu0 %801
    %v804 = vlaneseq
    %v805 = vshrl.u32 %v804, 7
    %v806 = vsub.s32 0, %v805
    %v807 = vrot.slane %v802, %v806
    %v808 = vrcp.pop %v807
    %v809 = vmul.f32 %v799, %v808
    %v811 = vlaneseq
    %v812 = vshrl.u32 %v811, 7
    %v813 = vsub.s32 0, %v812
    %v814 = vrot.slane %v809, %v813
    %815 = vrot.lane.b32.xlu0 %v814, 92
    %v816 = vpop.permute.xlu0 %815
    %vm818 = vcmask 516576
    %819 = vst.msk [vmem:[#allocation5] sm:$0x1] %vm818, %v816
    // Predicated region
    $region14: #{tpu_custom_call.1} parent=1 // pred_check
      _
    $region15: #{tpu_custom_call.1} parent=1 // pred_check_branch
      %821 = sbr.rel (0) target = $region17
    $region16: #{tpu_custom_call.1} parent=1 // pred_region
      %s823 = ssub.s32 16, 16
      %824 = vsyncadd [#allocation4], %s823
      %s826 = sshll.u32 [#allocation5], 4
      %s827 = int_to_ptr.vmem [resolvable:$true] %s826
      %829 = dma.vmem_to_hbm [thread:$0]  %s827, 16, %s2, [#allocation4]
    $region17: #{tpu_custom_call.1} parent=1 // pred_fallthru
      _
    // Predicated region
    $region18: #{tpu_custom_call.1} parent=1 // pred_check
      _
    $region19: #{tpu_custom_call.1} parent=1 // pred_check_branch
      %831 = sbr.rel (0) target = $region21
    $region20: #{tpu_custom_call.1} parent=1 // pred_region
      %832 = dma.done [#allocation4], 16
    $region21: #{tpu_custom_call.1} parent=1 // pred_fallthru
      _
    %833 = vsyncpa [#allocation3], 1
    %834 = vsyncpa [#allocation4], 1

</llo_original>
